<compile_context>
chip_gen: v6e
topology: v6e:2x2x1
jax: 0.10.0
libtpu: 0.0.40
codegen_flags: <defaults>
</compile_context>

<pallas_src>
import jax
import jax.numpy as jnp
from jax.experimental import pallas as pl
from jax.experimental.pallas import tpu as pltpu

LANE = 128
BLOCK_ROWS = 2048          # (2048,128) f32 block = 1 MiB; 3 inputs x 2 buffers = 6 MiB VMEM
NUM_PARTS = 2              # leading "parallel" grid axis (v7x megacore); harmless elsewhere


# ---------------------------------------------------------------------------
# Small-input fast path: whole problem in one block, scalar SMEM output.
# ---------------------------------------------------------------------------
def _single_block_kernel(inp_ref, mask_ref, reward_ref, out_ref):
    inp = inp_ref[...].astype(jnp.float32)
    m = mask_ref[...].astype(jnp.float32)      # mask.float()
    r = reward_ref[...].astype(jnp.float32)
    num = jnp.sum(inp * r * m)
    den = jnp.sum(m)
    out_ref[0, 0] = -num / den


# ---------------------------------------------------------------------------
# Tiled path: grid = (NUM_PARTS, blocks_per_part).  Per-part (8,128) partial
# sums are accumulated directly in the resident output blocks (VPU only);
# the final tiny reduction + divide happens in the wrapper.
# ---------------------------------------------------------------------------
def _make_tiled_kernel(rows, blocks_per_part):
    def kernel(inp_ref, mask_ref, reward_ref, num_ref, den_ref):
        p = pl.program_id(0)
        j = pl.program_id(1)

        # Unclamped global block index; ragged / phantom rows are masked below.
        blk = p * blocks_per_part + j
        row_ids = jax.lax.broadcasted_iota(jnp.int32, (BLOCK_ROWS, LANE), 0)
        valid = (blk * BLOCK_ROWS + row_ids) < rows

        inp = inp_ref[...].astype(jnp.float32)
        m = mask_ref[...].astype(jnp.float32)      # mask.float()
        r = reward_ref[...].astype(jnp.float32)

        m_masked = jnp.where(valid, m, 0.0)
        prod_masked = jnp.where(valid, inp * r * m, 0.0)

        # Partial reduce (2048,128) -> (8,128): pure vreg adds on the VPU.
        num_part = prod_masked.reshape(-1, 8, LANE).sum(axis=0)
        den_part = m_masked.reshape(-1, 8, LANE).sum(axis=0)

        @pl.when(j == 0)
        def _():
            num_ref[...] = jnp.zeros_like(num_ref)
            den_ref[...] = jnp.zeros_like(den_ref)

        num_ref[...] += num_part.reshape(1, 8, LANE)
        den_ref[...] += den_part.reshape(1, 8, LANE)

    return kernel


def reward_criterion(inp, mask, reward, ratio):
    """sum(-input * reward * mask) / sum(mask).  `ratio` is unused (as in PyTorch)."""
    # 0.95**ratio is dead code in the PyTorch forward; skipping it saves 1/4 of HBM traffic.
    del ratio

    if not jnp.issubdtype(mask.dtype, jnp.floating):
        mask = mask.astype(jnp.float32)            # mask.float() / dodge bool layouts

    n = inp.size
    inp_f = jnp.ravel(inp)
    mask_f = jnp.ravel(mask)
    reward_f = jnp.ravel(reward)

    # Pad only the last partial lane-row (tiny, only when n % 128 != 0).
    if n % LANE != 0:
        pad = LANE - n % LANE
        inp_f = jnp.pad(inp_f, (0, pad))
        mask_f = jnp.pad(mask_f, (0, pad))         # zero pad -> no effect on either sum
        reward_f = jnp.pad(reward_f, (0, pad))
    rows = inp_f.shape[0] // LANE

    inp2 = inp_f.reshape(rows, LANE)
    mask2 = mask_f.reshape(rows, LANE)
    reward2 = reward_f.reshape(rows, LANE)

    # ---- single-block fast path --------------------------------------------
    if rows <= BLOCK_ROWS:
        full_spec = pl.BlockSpec((rows, LANE), lambda i: (0, 0))
        out = pl.pallas_call(
            _single_block_kernel,
            out_shape=jax.ShapeDtypeStruct((1, 1), jnp.float32),
            grid_spec=pltpu.PrefetchScalarGridSpec(
                num_scalar_prefetch=0,
                grid=(1,),
                in_specs=[full_spec, full_spec, full_spec],
                out_specs=pl.BlockSpec((1, 1), lambda i: (0, 0),
                                       memory_space=pltpu.SMEM),
            ),
            compiler_params=pltpu.CompilerParams(
                dimension_semantics=("arbitrary",)),
        )(inp2, mask2, reward2)
        return out[0, 0]

    # ---- tiled streaming path -----------------------------------------------
    total_blocks = pl.cdiv(rows, BLOCK_ROWS)
    blocks_per_part = pl.cdiv(total_blocks, NUM_PARTS)

    def in_index_map(p, j):
        # Clamp phantom blocks (their contribution is masked to zero in-kernel).
        blk = jnp.minimum(p * blocks_per_part + j, total_blocks - 1)
        return (blk, 0)

    in_spec = pl.BlockSpec((BLOCK_ROWS, LANE), in_index_map)
    out_spec = pl.BlockSpec((1, 8, LANE), lambda p, j: (p, 0, 0))

    partial_num, partial_den = pl.pallas_call(
        _make_tiled_kernel(rows, blocks_per_part),
        out_shape=(jax.ShapeDtypeStruct((NUM_PARTS, 8, LANE), jnp.float32),
                   jax.ShapeDtypeStruct((NUM_PARTS, 8, LANE), jnp.float32)),
        grid_spec=pltpu.PrefetchScalarGridSpec(
            num_scalar_prefetch=0,
            grid=(NUM_PARTS, blocks_per_part),
            in_specs=[in_spec, in_spec, in_spec],
            out_specs=[out_spec, out_spec],
        ),
        compiler_params=pltpu.CompilerParams(
            dimension_semantics=("parallel", "arbitrary")),
    )(inp2, mask2, reward2)

    return -jnp.sum(partial_num) / jnp.sum(partial_den)


def reward_criterion_ref(inp, mask, reward, ratio):
    inp = jnp.ravel(inp).astype(jnp.float32)
    reward = jnp.ravel(reward).astype(jnp.float32)
    mask = jnp.ravel(mask).astype(jnp.float32)
    _ = jnp.power(0.95, jnp.ravel(ratio).astype(jnp.float32))  # parity: unused in output
    return jnp.sum(-inp * reward * mask) / jnp.sum(mask)


if __name__ == "__main__":
    # --- small demo (single-block path), shapes consistent with the module ---
    k1, k2, k3, k4 = jax.random.split(jax.random.PRNGKey(0), 4)
    batch, seq = 2, 8
    inp = -jnp.abs(jax.random.normal(k1, (batch, seq), dtype=jnp.float32))   # log-probs
    reward = jax.random.normal(k2, (batch, seq), dtype=jnp.float32)
    mask = (jax.random.uniform(k3, (batch, seq)) > 0.3).astype(jnp.float32)
    mask = mask.at[:, 0].set(1.0)                      # guarantee sum(mask) > 0
    ratio = jax.random.uniform(k4, (batch, seq), dtype=jnp.float32) * 5.0

    out_small = jax.block_until_ready(reward_criterion(inp, mask, reward, ratio))
    ref_small = reward_criterion_ref(inp, mask, reward, ratio)
    assert jnp.allclose(out_small, ref_small, atol=1e-5, rtol=1e-5), (out_small, ref_small)

    # --- larger check: tiled path with ragged last block + phantom block + 2 parts ---
    k5, k6, k7, k8 = jax.random.split(jax.random.PRNGKey(1), 4)
    n_big = 524_453            # rows = 4098 -> 3 blocks of 2048 rows -> grid (2, 2)
    inp_b = -jnp.abs(jax.random.normal(k5, (n_big,), dtype=jnp.float32))
    reward_b = jax.random.uniform(k6, (n_big,), dtype=jnp.float32)
    mask_b = (jax.random.uniform(k7, (n_big,)) > 0.3).astype(jnp.float32)
    mask_b = mask_b.at[0].set(1.0)
    ratio_b = jax.random.uniform(k8, (n_big,), dtype=jnp.float32) * 5.0

    out_big = jax.block_until_ready(reward_criterion(inp_b, mask_b, reward_b, ratio_b))
    ref_big = reward_criterion_ref(inp_b, mask_b, reward_b, ratio_b)
    assert jnp.allclose(out_big, ref_big, atol=1e-5, rtol=1e-4), (out_big, ref_big)

    print("KERNEL_OK")
</pallas_src>

<mosaic_0001>
module attributes {stable_mosaic.version = 11 : i64} {
  func.func @_single_block_kernel(%arg0: i32, %arg1: memref<1x128xf32, #tpu.memory_space<vmem>>, %arg2: memref<1x128xf32, #tpu.memory_space<vmem>>, %arg3: memref<1x128xf32, #tpu.memory_space<vmem>>, %arg4: memref<1x1xf32, #tpu.memory_space<smem>>) attributes {dimension_semantics = [#tpu.dimension_semantics<arbitrary>], iteration_bounds = array<i64: 1>, scalar_prefetch = 0 : i64, scratch_operands = 0 : i64, tpu.core_type = #tpu.core_type<tc>, window_params = [{pipeline_mode = #tpu.pipeline_mode<synchronous>, transform_indices = @transform_0, window_bounds = array<i64: 1, 128>}, {pipeline_mode = #tpu.pipeline_mode<synchronous>, transform_indices = @transform_1, window_bounds = array<i64: 1, 128>}, {pipeline_mode = #tpu.pipeline_mode<synchronous>, transform_indices = @transform_2, window_bounds = array<i64: 1, 128>}, {transform_indices = @transform_3, window_bounds = array<i64: 1, 1>}]} {
    %c0 = arith.constant 0 : index
    %c0_0 = arith.constant 0 : index
    %0 = vector.load %arg1[%c0, %c0_0] : memref<1x128xf32, #tpu.memory_space<vmem>>, vector<1x128xf32>
    %c0_1 = arith.constant 0 : index
    %c0_2 = arith.constant 0 : index
    %1 = vector.load %arg2[%c0_1, %c0_2] : memref<1x128xf32, #tpu.memory_space<vmem>>, vector<1x128xf32>
    %c0_3 = arith.constant 0 : index
    %c0_4 = arith.constant 0 : index
    %2 = vector.load %arg3[%c0_3, %c0_4] : memref<1x128xf32, #tpu.memory_space<vmem>>, vector<1x128xf32>
    %3 = arith.mulf %0, %2 : vector<1x128xf32>
    %4 = arith.mulf %3, %1 : vector<1x128xf32>
    %5 = vector.shape_cast %4 : vector<1x128xf32> to vector<1x1x128xf32>
    %cst = arith.constant dense<0.000000e+00> : vector<1xf32>
    %6 = vector.multi_reduction <add>, %5, %cst [1, 2] : vector<1x1x128xf32> to vector<1xf32>
    %7 = vector.shape_cast %6 : vector<1xf32> to vector<1x1x1xf32>
    %8 = vector.extract %7[0, 0, 0] : f32 from vector<1x1x1xf32>
    %9 = vector.shape_cast %1 : vector<1x128xf32> to vector<1x1x128xf32>
    %cst_5 = arith.constant dense<0.000000e+00> : vector<1xf32>
    %10 = vector.multi_reduction <add>, %9, %cst_5 [1, 2] : vector<1x1x128xf32> to vector<1xf32>
    %11 = vector.shape_cast %10 : vector<1xf32> to vector<1x1x1xf32>
    %12 = vector.extract %11[0, 0, 0] : f32 from vector<1x1x1xf32>
    %cst_6 = arith.constant 0.000000e+00 : f32
    %13 = arith.subf %cst_6, %8 : f32
    %14 = arith.divf %13, %12 : f32
    %c0_7 = arith.constant 0 : index
    %c0_8 = arith.constant 0 : index
    %15 = memref.load %arg4[%c0_7, %c0_8] : memref<1x1xf32, #tpu.memory_space<smem>>
    memref.store %14, %arg4[%c0_7, %c0_8] : memref<1x1xf32, #tpu.memory_space<smem>>
    return
  }
  func.func @transform_0(%arg0: i32) -> (i32, i32) {
    %c0_i32 = arith.constant 0 : i32
    %c0_i32_0 = arith.constant 0 : i32
    %c0_i32_1 = arith.constant 0 : i32
    return %c0_i32, %c0_i32_0 : i32, i32
  }
  func.func @transform_1(%arg0: i32) -> (i32, i32) {
    %c0_i32 = arith.constant 0 : i32
    %c0_i32_0 = arith.constant 0 : i32
    %c0_i32_1 = arith.constant 0 : i32
    return %c0_i32, %c0_i32_0 : i32, i32
  }
  func.func @transform_2(%arg0: i32) -> (i32, i32) {
    %c0_i32 = arith.constant 0 : i32
    %c0_i32_0 = arith.constant 0 : i32
    %c0_i32_1 = arith.constant 0 : i32
    return %c0_i32, %c0_i32_0 : i32, i32
  }
  func.func @transform_3(%arg0: i32) -> (i32, i32) {
    %c0_i32 = arith.constant 0 : i32
    %c0_i32_0 = arith.constant 0 : i32
    %c0_i32_1 = arith.constant 0 : i32
    return %c0_i32, %c0_i32_0 : i32, i32
  }
}

</mosaic_0001>

<llo_original>
// kernel: tpu_custom_call.1
$region0: #{tpu_custom_call.1}
  #allocation0 [shape = 'u32[]', space=smem, size = 0x4, offset = 0x4, fixed_abs, tag = 'smem constant byte address 0x4 - core index']
  #allocation1 [shape = 'u32[144,128]{1,0:T(1,128)}', space=vmem, size = 0x12000, scoped, tag = 'internal scratch']
  %s0 = inlined_call_operand.hbm [shape: f32[1,128], index: 0, kind: input, shape index: {}]
  %s1 = inlined_call_operand.vmem [shape: f32[1,128], index: 1, kind: input, shape index: {}]
  %s2 = inlined_call_operand.vmem [shape: f32[1,128], index: 2, kind: input, shape index: {}]
  %s3 = inlined_call_operand.hbm [shape: f32[1,1], index: 3, kind: output, shape index: {}]
  %s4 = sld [smem:[#allocation0]]
  $region26: #{tpu_custom_call.1} parent=0
    _
  %s6 = ssub.s32 1, %s4
  %s7 = scalar_select 0, %s6, %s4
  $region1: #{tpu_custom_call.1} parent=0
    #allocation2 [shape = 'u8[512]{0}', space=vmem, size = 0x400, scoped, tag = 'input window, operand 0, single buffered']
    #allocation3 [shape = 's32[1]{0}', space=sflag, size = 0x4, scoped, tag = 'scoped memory for tpu_custom_call.1']
    #allocation4 [shape = 's32[1]{0}', space=sflag, size = 0x4, scoped, tag = 'scoped memory for tpu_custom_call.1']
    #allocation5 [shape = 'u8[512]{0}', space=smem, size = 0x200, scoped, tag = 'output window, operand 0, single buffered']
    %8 = vsyncpa [#allocation3], 0
    %9 = vsyncpa [#allocation4], 0
    // Predicated region
    $region2: #{tpu_custom_call.1} parent=1 // pred_check
      _
    $region3: #{tpu_custom_call.1} parent=1 // pred_check_branch
      %11 = sbr.rel (0) target = $region5
    $region4: #{tpu_custom_call.1} parent=1 // pred_region
      %s13 = ssub.s32 16, 16
      %14 = vsyncadd [#allocation3], %s13
      %s16 = sshll.u32 [#allocation2], 4
      %s17 = int_to_ptr.vmem [resolvable:$true] %s16
      %19 = dma.hbm_to_vmem [thread:$0]  %s0, 16, %s17, [#allocation3]
    $region5: #{tpu_custom_call.1} parent=1 // pred_fallthru
      _
    // Predicated region
    $region6: #{tpu_custom_call.1} parent=1 // pred_check
      _
    $region7: #{tpu_custom_call.1} parent=1 // pred_check_branch
      %21 = sbr.rel (0) target = $region9
    $region8: #{tpu_custom_call.1} parent=1 // pred_region
      _
    $region9: #{tpu_custom_call.1} parent=1 // pred_fallthru
      _
    // Predicated region
    $region10: #{tpu_custom_call.1} parent=1 // pred_check
      _
    $region11: #{tpu_custom_call.1} parent=1 // pred_check_branch
      %23 = sbr.rel (0) target = $region13
    $region12: #{tpu_custom_call.1} parent=1 // pred_region
      _
    $region13: #{tpu_custom_call.1} parent=1 // pred_fallthru
      _
    // Predicated region
    $region14: #{tpu_custom_call.1} parent=1 // pred_check
      _
    $region15: #{tpu_custom_call.1} parent=1 // pred_check_branch
      %25 = sbr.rel (0) target = $region17
    $region16: #{tpu_custom_call.1} parent=1 // pred_region
      %26 = dma.done [#allocation3], 16
    $region17: #{tpu_custom_call.1} parent=1 // pred_fallthru
      _
    %v27 = vld [vmem:[#allocation2] sm:$0x1]
    %v28 = vld [vmem:[%s1] sm:$0x1]
    %v29 = vld [vmem:[%s2] sm:$0x1]
    %v30 = vmul.f32 %v27, %v29
    %v31 = vmul.f32 %v30, %v28
    %vm32 = vcmask 1040384
    %v33 = vsel %vm32, %v31, 0.0
    %34 = vadd.xlane.f32.xlu0 %v33
    %v35 = vpop.xlane.xlu0 %34
    %v36 = vrot.slane %v35, 4
    %v37 = vadd.f32 %v35, %v36
    %v38 = vrot.slane %v37, 2
    %v39 = vadd.f32 %v37, %v38
    %v40 = vrot.slane %v39, 1
    %v41 = vadd.f32 %v39, %v40
    %s42 = vtos %v41
    %v43 = vsel %vm32, %v28, 0.0
    %44 = vadd.xlane.f32.xlu0 %v43
    %v45 = vpop.xlane.xlu0 %44
    %v46 = vrot.slane %v45, 4
    %v47 = vadd.f32 %v45, %v46
    %v48 = vrot.slane %v47, 2
    %v49 = vadd.f32 %v47, %v48
    %v50 = vrot.slane %v49, 1
    %v51 = vadd.f32 %v49, %v50
    %s52 = vtos %v51
    %s53 = ssub.f32 0.0, %s42
    %v54 = vstv %s52
    %v55 = vrcp.pop %v54
    %s56 = vtos %v55
    %s57 = smul.f32 %s53, %s56
    %s58 = scalar_lea.smem [#allocation5], 0
    %59 = sst [smem:[%s58]] %s57
    // Predicated region
    $region18: #{tpu_custom_call.1} parent=1 // pred_check
      _
    $region19: #{tpu_custom_call.1} parent=1 // pred_check_branch
      %61 = sbr.rel (0) target = $region21
    $region20: #{tpu_custom_call.1} parent=1 // pred_region
      %s63 = ssub.s32 16, 16
      %64 = vsyncadd [#allocation4], %s63
      %67 = dma.smem_to_hbm [#allocation5], 16, %s3, [#allocation4]
    $region21: #{tpu_custom_call.1} parent=1 // pred_fallthru
      _
    // Predicated region
    $region22: #{tpu_custom_call.1} parent=1 // pred_check
      _
    $region23: #{tpu_custom_call.1} parent=1 // pred_check_branch
      %69 = sbr.rel (0) target = $region25
    $region24: #{tpu_custom_call.1} parent=1 // pred_region
      %70 = dma.done [#allocation4], 16
    $region25: #{tpu_custom_call.1} parent=1 // pred_fallthru
      _
    %71 = sfence
    %72 = vsyncpa [#allocation3], 1
    %73 = vsyncpa [#allocation4], 1

</llo_original>
